<compile_context>
chip_gen: v5e
topology: v5e:2x2
jax: 0.10.0
libtpu: 0.0.40
codegen_flags: <defaults>
</compile_context>

<pallas_src>
import jax
import jax.numpy as jnp
from jax.experimental import pallas as pl
from jax.experimental.pallas import tpu as pltpu


def _shadow_kernel(x_ref, img_ref, out_ref):
    # x_ref:   SMEM, shape (n,)            -> per-sample shadow argument (whole array)
    # img_ref: VMEM, shape (1, TR, LANES)  -> lane-dense image tile (may be partial)
    # out_ref: VMEM, shape (1, TR, LANES)
    b = pl.program_id(0)                         # batch index
    exponent = 1.0 - x_ref[b]                    # x = -x + 1
    base = img_ref[...].astype(jnp.float32) + 1e-09   # > 0 for inputs in [0, 1]
    # pow(base, exponent) == exp(exponent * log(base)) for positive base.
    y = jnp.exp(exponent * jnp.log(base))
    # exp(.) > 0, so a single upper clamp is equivalent to both torch clamps.
    # NaNs can appear only in the masked-out OOB region of a partial last tile.
    out_ref[...] = jnp.minimum(y, 1.0).astype(out_ref.dtype)


def shadow_filter(image, x, *, block_elems=512 * 1024, min_grid_steps=8):
    """image: [n, c, h, w] float in [0, 1]; x: [n, 1, 1, 1] float in [-1, 1]."""
    n, c, h, w = image.shape
    f = c * h * w
    x_flat = x.reshape(n).astype(jnp.float32)

    # Lane width: prefer 512 (lane-dense, no pad), fall back to 128, and only
    # pad a tiny (<128 elem) tail per sample when f is not a multiple of 128.
    if f % 512 == 0:
        lanes = 512
    else:
        lanes = 128
    pad = (-f) % lanes

    flat = image.reshape(n, f)
    if pad:
        # Pad value 1.0: pow maps it to 1.0 (no inf/NaN); tail is dropped below.
        flat = jnp.pad(flat, ((0, 0), (0, pad)), constant_values=1.0)
    f_pad = f + pad
    rows = f_pad // lanes
    flat = flat.reshape(n, rows, lanes)

    # Row-tile size: ~block_elems f32 per block (default 2 MiB), multiple of 8.
    tr = max(8, block_elems // lanes)
    tr -= tr % 8
    if tr >= rows:
        tr = rows  # full extent along rows: no sublane-divisibility requirement
    # v7x megacore: ensure enough parallel grid steps to occupy both TCs,
    # halving while the tile stays a multiple of 8 sublanes.
    while n * pl.cdiv(rows, tr) < min_grid_steps and tr % 16 == 0 and tr >= 16:
        tr //= 2

    grid = (n, pl.cdiv(rows, tr))  # partial last row-tile handled by Pallas masking

    out = pl.pallas_call(
        _shadow_kernel,
        out_shape=jax.ShapeDtypeStruct((n, rows, lanes), image.dtype),
        grid=grid,
        in_specs=[
            # Whole (n,) scalar array resident in SMEM; no per-step scalar DMA.
            pl.BlockSpec(memory_space=pltpu.MemorySpace.SMEM),
            pl.BlockSpec((1, tr, lanes), lambda b, r: (b, r, 0)),
        ],
        out_specs=pl.BlockSpec((1, tr, lanes), lambda b, r: (b, r, 0)),
        compiler_params=pltpu.CompilerParams(
            dimension_semantics=("parallel", "parallel"),
        ),
    )(x_flat, flat)

    if pad:
        return out.reshape(n, f_pad)[:, :f].reshape(n, c, h, w)
    return out.reshape(n, c, h, w)


def _reference(image, x):
    x = -x + 1.0
    img = jnp.clip(jnp.power(image.astype(jnp.float32) + 1e-09, x), 0.0, 1.0)
    return jnp.clip(img, 0.0, 1.0).astype(image.dtype)


if __name__ == "__main__":
    key = jax.random.PRNGKey(0)
    k1, k2, k3, k4, k5, k6 = jax.random.split(key, 6)

    # Primary small test, matching the module signature: [n, 3, h, w] / [n, 1, 1, 1].
    n, c, h, w = 2, 3, 16, 16                      # f = 768 -> lanes=128, no padding
    image = jax.random.uniform(k1, (n, c, h, w), dtype=jnp.float32)            # [0, 1]
    x = jax.random.uniform(k2, (n, 1, 1, 1), dtype=jnp.float32) * 2.0 - 1.0    # [-1, 1]
    out = jax.block_until_ready(shadow_filter(image, x))
    assert out.shape == (n, c, h, w)
    assert jnp.allclose(out, _reference(image, x), atol=1e-5, rtol=1e-5), \
        "mismatch vs reference (small)"

    # Multi-tile path with a partial last row-tile (rows=24, tr=16 -> masked tail).
    n2, h2, w2 = 2, 64, 64                         # f = 12288 -> lanes=512, no padding
    image2 = jax.random.uniform(k3, (n2, c, h2, w2), dtype=jnp.float32)
    x2 = jax.random.uniform(k4, (n2, 1, 1, 1), dtype=jnp.float32) * 2.0 - 1.0
    out2 = jax.block_until_ready(
        shadow_filter(image2, x2, block_elems=512 * 16, min_grid_steps=1))
    assert jnp.allclose(out2, _reference(image2, x2), atol=1e-5, rtol=1e-5), \
        "mismatch vs reference (partial tile)"

    # Ragged path: f = 300 is not a multiple of 128 -> tiny tail pad + slice.
    n3, h3, w3 = 2, 10, 10
    image3 = jax.random.uniform(k5, (n3, c, h3, w3), dtype=jnp.float32)
    x3 = jax.random.uniform(k6, (n3, 1, 1, 1), dtype=jnp.float32) * 2.0 - 1.0
    out3 = jax.block_until_ready(shadow_filter(image3, x3))
    assert jnp.allclose(out3, _reference(image3, x3), atol=1e-5, rtol=1e-5), \
        "mismatch vs reference (ragged)"

    print("KERNEL_OK")
</pallas_src>

<mosaic_0001>
module attributes {stable_mosaic.version = 11 : i64} {
  func.func @_shadow_kernel(%arg0: i32, %arg1: i32, %arg2: memref<2xf32, #tpu.memory_space<smem>>, %arg3: memref<1x6x128xf32, #tpu.memory_space<vmem>>, %arg4: memref<1x6x128xf32, #tpu.memory_space<vmem>>) attributes {dimension_semantics = [#tpu.dimension_semantics<parallel>, #tpu.dimension_semantics<parallel>], iteration_bounds = array<i64: 2, 1>, scalar_prefetch = 0 : i64, scratch_operands = 0 : i64, tpu.core_type = #tpu.core_type<tc>, window_params = [{transform_indices = @transform_0, window_bounds = array<i64: 2>}, {transform_indices = @transform_1, window_bounds = array<i64: 1, 6, 128>}, {transform_indices = @transform_2, window_bounds = array<i64: 1, 6, 128>}]} {
    %0 = arith.index_cast %arg0 : i32 to index
    %1 = memref.load %arg2[%0] : memref<2xf32, #tpu.memory_space<smem>>
    %cst = arith.constant 1.000000e+00 : f32
    %2 = arith.subf %cst, %1 : f32
    %c0 = arith.constant 0 : index
    %c0_0 = arith.constant 0 : index
    %c0_1 = arith.constant 0 : index
    %3 = vector.load %arg3[%c0, %c0_0, %c0_1] : memref<1x6x128xf32, #tpu.memory_space<vmem>>, vector<1x6x128xf32>
    %cst_2 = arith.constant 9.99999971E-10 : f32
    %4 = vector.broadcast %cst_2 : f32 to vector<1x6x128xf32>
    %5 = arith.addf %3, %4 : vector<1x6x128xf32>
    %6 = math.log %5 : vector<1x6x128xf32>
    %7 = vector.broadcast %2 : f32 to vector<1x6x128xf32>
    %8 = arith.mulf %7, %6 : vector<1x6x128xf32>
    %9 = math.exp %8 : vector<1x6x128xf32>
    %cst_3 = arith.constant 1.000000e+00 : f32
    %10 = vector.broadcast %cst_3 : f32 to vector<1x6x128xf32>
    %11 = arith.minimumf %9, %10 : vector<1x6x128xf32>
    %c0_4 = arith.constant 0 : index
    %c0_5 = arith.constant 0 : index
    %c0_6 = arith.constant 0 : index
    %12 = vector.load %arg4[%c0_4, %c0_5, %c0_6] : memref<1x6x128xf32, #tpu.memory_space<vmem>>, vector<1x6x128xf32>
    tpu.vector_store %arg4[%c0_4, %c0_5, %c0_6], %11 {strides = array<i32>} : memref<1x6x128xf32, #tpu.memory_space<vmem>>, vector<1x6x128xf32>,
    return
  }
  func.func @transform_0(%arg0: i32, %arg1: i32) -> i32 {
    %c0_i32 = arith.constant 0 : i32
    %c0_i32_0 = arith.constant 0 : i32
    return %c0_i32 : i32
  }
  func.func @transform_1(%arg0: i32, %arg1: i32) -> (i32, i32, i32) {
    %c0_i32 = arith.constant 0 : i32
    %c0_i32_0 = arith.constant 0 : i32
    return %arg0, %arg1, %c0_i32 : i32, i32, i32
  }
  func.func @transform_2(%arg0: i32, %arg1: i32) -> (i32, i32, i32) {
    %c0_i32 = arith.constant 0 : i32
    %c0_i32_0 = arith.constant 0 : i32
    return %arg0, %arg1, %c0_i32 : i32, i32, i32
  }
}

</mosaic_0001>

<llo_original>
// kernel: tpu_custom_call.1
$region0: #{tpu_custom_call.1}
  #allocation0 [shape = 'u32[]', space=smem, size = 0x4, offset = 0x4, fixed_abs, tag = 'smem constant byte address 0x4 - core index']
  #allocation1 [shape = 'u32[72,128]{1,0:T(1,128)}', space=vmem, size = 0x9000, scoped, tag = 'internal scratch']
  %s0 = inlined_call_operand.vmem [shape: f32[2], index: 0, kind: input, shape index: {}]
  %s1 = inlined_call_operand.vmem [shape: f32[2,6,128], index: 1, kind: input, shape index: {}]
  %s2 = inlined_call_operand.vmem [shape: f32[2,6,128], index: 2, kind: output, shape index: {}]
  %s3 = sld [smem:[#allocation0]]
  $region45: #{tpu_custom_call.1} parent=0
    _
  %s5 = ssub.s32 1, %s3
  %s6 = scalar_select 0, %s5, %s3
  $region1: #{tpu_custom_call.1} parent=0
    #allocation2 [shape = 'u8[512]{0}', space=smem, size = 0x200, scoped, tag = 'input window, operand 0, single buffered']
    #allocation3 [shape = 's32[2]{0}', space=sflag, size = 0x8, scoped, tag = 'scoped memory for tpu_custom_call.1']
    %7 = vsyncpa [#allocation3], 0
    loop: start=0, step=1, limit=4
    $region2: #{tpu_custom_call.1} parent=1 // loop_pre_header
      _
    $region3: #{tpu_custom_call.1} parent=1 // loop_header
      %s9 = sphi 0, %s13
      %p10 = scmp.ge.s32.totalorder %s9, 4
      %s16 = sphi 0, %s28
      %s17 = sphi 0, %s24
      %s18 = sphi 0, %s16
      %s19 = sphi 0, %s17
      %s20 = sphi 0, %s18
      %s21 = sphi 0, %s19
      %s29 = sphi 0, %s29
      %s31 = sphi 0, %s29
      %s32 = sphi 0, %s31
      %s46 = sphi 0, %s32
      %s54 = sphi 0, %s56
      %s57 = sphi 0, %s54
      %s58 = sphi 0, %s57
      %s74 = sphi 0, %s58
      %s82 = sphi 0, %s84
      %s85 = sphi 0, %s82
      %s86 = sphi 0, %s85
      %s102 = sphi 0, %s86
    $region4: #{tpu_custom_call.1} parent=1 // loop_header_branch
      %12 = sbr.rel (%p10) target = $region8
    $region5: #{tpu_custom_call.1} parent=1 // loop_body
      %s14 = ssub.s32 %s9, 1
      %s15 = ssub.s32 %s9, 2
      %s22 = sadd.s32 1, %s17
      %p23 = scmp.ge.s32.totalorder %s22, 1
      %s24 = scalar_select %p23, 0, %s22
      %s25 = sadd.s32 1, %s16
      %s26 = scalar_select %p23, %s25, %s16
      %p27 = scmp.ge.s32.totalorder %s26, 2
      %s28 = scalar_select %p27, 0, %s26
      %s30 = sadd.s32 %s29, 1
      %p33 = scmp.eq.s32.totalorder %s9, 1
      %p34 = scmp.ne.s32.totalorder %s29, %s31
      %p35 = scmp.eq.s32.totalorder %s9, 0
      %p36 = por %p34, %p35
      %p37 = scmp.ne.s32.totalorder %s29, %s31
      %p38 = scmp.eq.s32.totalorder %s14, 1
      %p39 = por %p37, %p38
      %p40 = scmp.ne.s32.totalorder %s31, %s32
      %p41 = scmp.eq.s32.totalorder %s14, 0
      %p42 = por %p40, %p41
      %p43 = scmp.ne.s32.totalorder %s31, %s32
      %p44 = scmp.eq.s32.totalorder %s15, 1
      %p45 = por %p43, %p44
      %p47 = scmp.ne.s32.totalorder %s32, %s46
      %p48 = scmp.eq.s32.totalorder %s15, 0
      %p49 = por %p47, %p48
      %s50 = ssub.s32 %s16, %s28
      %s51 = ssub.s32 %s17, %s24
      %s52 = sor.u32 %s50, %s51
      %p53 = scmp.eq.s32.totalorder %s52, 0
      %s55 = sadd.s32 %s54, 1
      %s56 = scalar_select %p53, %s54, %s55
      %p59 = pneg %p53
      %p60 = scmp.eq.s32.totalorder %s9, 1
      %p61 = por %p59, %p60
      %p62 = scmp.ne.s32.totalorder %s54, %s57
      %p63 = scmp.eq.s32.totalorder %s9, 0
      %p64 = por %p62, %p63
      %p65 = scmp.ne.s32.totalorder %s54, %s57
      %p66 = scmp.eq.s32.totalorder %s14, 1
      %p67 = por %p65, %p66
      %p68 = scmp.ne.s32.totalorder %s57, %s58
      %p69 = scmp.eq.s32.totalorder %s14, 0
      %p70 = por %p68, %p69
      %p71 = scmp.ne.s32.totalorder %s57, %s58
      %p72 = scmp.eq.s32.totalorder %s15, 1
      %p73 = por %p71, %p72
      %p75 = scmp.ne.s32.totalorder %s58, %s74
      %p76 = scmp.eq.s32.totalorder %s15, 0
      %p77 = por %p75, %p76
      %s78 = ssub.s32 %s16, %s28
      %s79 = ssub.s32 %s17, %s24
      %s80 = sor.u32 %s78, %s79
      %p81 = scmp.eq.s32.totalorder %s80, 0
      %s83 = sadd.s32 %s82, 1
      %s84 = scalar_select %p81, %s82, %s83
      %p87 = pneg %p81
      %p88 = scmp.eq.s32.totalorder %s9, 1
      %p89 = por %p87, %p88
      %p90 = scmp.ne.s32.totalorder %s82, %s85
      %p91 = scmp.eq.s32.totalorder %s9, 0
      %p92 = por %p90, %p91
      %p93 = scmp.ne.s32.totalorder %s82, %s85
      %p94 = scmp.eq.s32.totalorder %s14, 1
      %p95 = por %p93, %p94
      %p96 = scmp.ne.s32.totalorder %s85, %s86
      %p97 = scmp.eq.s32.totalorder %s14, 0
      %p98 = por %p96, %p97
      %p99 = scmp.ne.s32.totalorder %s85, %s86
      %p100 = scmp.eq.s32.totalorder %s15, 1
      %p101 = por %p99, %p100
      %p103 = scmp.ne.s32.totalorder %s86, %s102
      %p104 = scmp.eq.s32.totalorder %s15, 0
      %p105 = por %p103, %p104
      %p106 = scmp.le.s32.totalorder 1, %s9
      %p107 = scmp.lt.s32.totalorder %s9, 3
      %p108 = pnand %p106, %p107
      %p109 = pneg %p108
      // Predicated region
      $region9: #{tpu_custom_call.1} parent=5 // pred_check
        _
      $region10: #{tpu_custom_call.1} parent=5 // pred_check_branch
        %111 = sbr.rel (%p108) target = $region12
      $region11: #{tpu_custom_call.1} parent=5 // pred_region
        %s112 = ssub.s32 %s9, 1
        // Predicated region
        $region13: #{tpu_custom_call.1} parent=11 // pred_check
          %p113 = pneg %p42
        $region14: #{tpu_custom_call.1} parent=11 // pred_check_branch
          %115 = sbr.rel (%p113) target = $region16
        $region15: #{tpu_custom_call.1} parent=11 // pred_region
          %117 = vsyncadd [#allocation3], 0
          %s119 = sshll.u32 %s0, 4
          %s120 = int_to_ptr.vmem [resolvable:$true] %s119
          %122 = dma.vmem_to_smem %s120, 16, [#allocation2], [#allocation3]
        $region16: #{tpu_custom_call.1} parent=11 // pred_fallthru
          _
      $region12: #{tpu_custom_call.1} parent=5 // pred_fallthru
        _
      %p123 = scmp.lt.s32.totalorder %s9, 2
      // Predicated region
      $region17: #{tpu_custom_call.1} parent=5 // pred_check
        %p124 = pneg %p123
      $region18: #{tpu_custom_call.1} parent=5 // pred_check_branch
        %126 = sbr.rel (%p124) target = $region20
      $region19: #{tpu_custom_call.1} parent=5 // pred_region
        // Predicated region
        $region21: #{tpu_custom_call.1} parent=19 // pred_check
          %p127 = pneg %p64
        $region22: #{tpu_custom_call.1} parent=19 // pred_check_branch
          %129 = sbr.rel (%p127) target = $region24
        $region23: #{tpu_custom_call.1} parent=19 // pred_region
          %p130 = scmp.lt.s32.totalorder %s16, 1
          %s131 = scalar_select %p130, %s16, 1
          %p132 = scmp.lt.s32.totalorder %s17, 0
          %s133 = scalar_select %p132, %s17, 0
          %s134 = sadd.s32 %s133, %s131
          %s135 = smul.addr %s134, 8
          %s136 = scalar_lea.vmem %s1, %s135
        $region24: #{tpu_custom_call.1} parent=19 // pred_fallthru
          _
      $region20: #{tpu_custom_call.1} parent=5 // pred_fallthru
        _
      %p137 = scmp.le.s32.totalorder 1, %s9
      %p138 = scmp.lt.s32.totalorder %s9, 3
      %p139 = pnand %p137, %p138
      %p140 = pneg %p139
      // Predicated region
      $region25: #{tpu_custom_call.1} parent=5 // pred_check
        _
      $region26: #{tpu_custom_call.1} parent=5 // pred_check_branch
        %142 = sbr.rel (%p139) target = $region28
      $region27: #{tpu_custom_call.1} parent=5 // pred_region
        %s143 = ssub.s32 %s9, 1
        // Predicated region
        $region29: #{tpu_custom_call.1} parent=27 // pred_check
          %p144 = pneg %p42
        $region30: #{tpu_custom_call.1} parent=27 // pred_check_branch
          %146 = sbr.rel (%p144) target = $region32
        $region31: #{tpu_custom_call.1} parent=27 // pred_region
          %148 = dma.done [#allocation3], 16
        $region32: #{tpu_custom_call.1} parent=27 // pred_fallthru
          _
        %149 = sfence
        %p150 = pneg %p42
        %p151 = pneg %p39
        %p152 = scmp.lt.s32.totalorder %s18, 1
        %s153 = scalar_select %p152, %s18, 1
        %p154 = scmp.lt.s32.totalorder %s19, 0
        %s155 = scalar_select %p154, %s19, 0
        %s156 = sadd.s32 %s155, %s153
        %s157 = smul.addr %s156, 8
        %s158 = scalar_lea.vmem %s1, %s157
        %p159 = pneg %p70
        %p160 = pneg %p67
        %p161 = pneg %p98
        %p162 = pneg %p95
        %p163 = scmp.lt.s32.totalorder %s18, 1
        %s164 = scalar_select %p163, %s18, 1
        %p165 = scmp.lt.s32.totalorder %s19, 0
        %s166 = scalar_select %p165, %s19, 0
        %s167 = sadd.s32 %s166, %s164
        %s168 = smul.addr %s167, 8
        %s169 = scalar_lea.vmem %s2, %s168
        %p170 = scmp.lt.s32.totalorder %s18, 1
        %s171 = scalar_select %p170, %s18, 1
        %p172 = scmp.lt.s32.totalorder %s19, 0
        %s173 = scalar_select %p172, %s19, 0
        %s174 = sadd.s32 %s173, %s171
        %s175 = smul.addr %s174, 8
        %s176 = scalar_lea.vmem %s1, %s175
        %p177 = scmp.lt.s32.totalorder %s18, 1
        %s178 = scalar_select %p177, %s18, 1
        %p179 = scmp.lt.s32.totalorder %s19, 0
        %s180 = scalar_select %p179, %s19, 0
        %s181 = sadd.s32 %s180, %s178
        %s182 = smul.addr %s181, 8
        %s183 = scalar_lea.vmem %s2, %s182
        %s184 = sld [smem:[#allocation2 + %s18]]
        %s185 = ssub.f32 1.0, %s184
        %v186 = vld [vmem:[%s176] sm:$0x3f]
        %v187 = vadd.f32 %v186, 1e-09
        %v188 = vlog2.pop %v187
        %v189 = vmul.f32 %v188, 0.6931472
        %v190 = vstv %s185
        %v191 = vmul.f32 %v190, %v189
        %v192 = vmul.f32 %v191, 1.442695
        %v193 = vpow.pop %v192
        %v194 = vmin.f32 %v193, 1.0
        %195 = vst [vmem:[%s183] sm:$0x3f] %v194
        %p196 = scmp.lt.s32.totalorder %s18, 1
        %s197 = scalar_select %p196, %s18, 1
        %p198 = scmp.lt.s32.totalorder %s19, 0
        %s199 = scalar_select %p198, %s19, 0
        %s200 = sadd.s32 %s199, %s197
        %s201 = smul.addr %s200, 8
        %s202 = scalar_lea.vmem %s2, %s201
        // Predicated region
        $region33: #{tpu_custom_call.1} parent=27 // pred_check
          %p203 = pneg %p95
        $region34: #{tpu_custom_call.1} parent=27 // pred_check_branch
          %205 = sbr.rel (%p203) target = $region36
        $region35: #{tpu_custom_call.1} parent=27 // pred_region
          _
        $region36: #{tpu_custom_call.1} parent=27 // pred_fallthru
          _
      $region28: #{tpu_custom_call.1} parent=5 // pred_fallthru
        _
      %p206 = scmp.le.s32.totalorder 2, %s9
      // Predicated region
      $region37: #{tpu_custom_call.1} parent=5 // pred_check
        %p207 = pneg %p206
      $region38: #{tpu_custom_call.1} parent=5 // pred_check_branch
        %209 = sbr.rel (%p207) target = $region40
      $region39: #{tpu_custom_call.1} parent=5 // pred_region
        %s210 = ssub.s32 %s9, 2
        // Predicated region
        $region41: #{tpu_custom_call.1} parent=39 // pred_check
          %p211 = pneg %p101
        $region42: #{tpu_custom_call.1} parent=39 // pred_check_branch
          %213 = sbr.rel (%p211) target = $region44
        $region43: #{tpu_custom_call.1} parent=39 // pred_region
          %p214 = scmp.lt.s32.totalorder %s20, 1
          %s215 = scalar_select %p214, %s20, 1
          %p216 = scmp.lt.s32.totalorder %s21, 0
          %s217 = scalar_select %p216, %s21, 0
          %s218 = sadd.s32 %s217, %s215
          %s219 = smul.addr %s218, 8
          %s220 = scalar_lea.vmem %s2, %s219
        $region44: #{tpu_custom_call.1} parent=39 // pred_fallthru
          _
      $region40: #{tpu_custom_call.1} parent=5 // pred_fallthru
        _
    $region6: #{tpu_custom_call.1} parent=1 // loop_footer
      %s13 = sadd.s32 1, %s9
    $region7: #{tpu_custom_call.1} parent=1 // loop_footer_branch
      %8 = sbr.rel target = $region3
    $region8: #{tpu_custom_call.1} parent=1 // loop_exit
      _
    %221 = vsyncpa [#allocation3], 1
    %s222 = scalar_lea.sflag [#allocation3], 1
    %223 = vsyncpa %s222, 1

</llo_original>
